<compile_context>
chip_gen: v5e
topology: v5e:2x2
jax: 0.10.0
libtpu: 0.0.40
codegen_flags: <defaults>
</compile_context>

<pallas_src>
import jax
import jax.numpy as jnp
from jax.experimental import pallas as pl
from jax.experimental.pallas import tpu as pltpu


def span_loss_kernel(tgt_ref, pred_ref, sum_ref, cnt_ref):
    # Grid: (p = parallel row-shard, j = sequential accumulation step).
    j = pl.program_id(1)

    @pl.when(j == 0)
    def _():
        sum_ref[...] = jnp.zeros_like(sum_ref)
        cnt_ref[...] = jnp.zeros_like(cnt_ref)

    logits = pred_ref[...].astype(jnp.float32)                 # (T, C)

    # Numerically stable log-sum-exp over the class (lane) axis.
    m = jnp.max(logits, axis=-1, keepdims=True)                # (T, 1)
    shifted = logits - m                                       # (T, C)
    lse = jnp.log(jnp.sum(jnp.exp(shifted), axis=-1, keepdims=True))  # (T, 1)

    tgt = tgt_ref[...]                                         # (T, 1) int32
    valid = tgt >= 0                                           # ignore_index=-100
    safe_tgt = jnp.where(valid, tgt, 0)                        # in-bounds gather idx

    # Pick the target's shifted logit without materializing full log-probs or a
    # float one-hot: masked lane-reduce of `shifted`.
    class_ids = jax.lax.broadcasted_iota(jnp.int32, logits.shape, 1)   # (T, C)
    picked = jnp.sum(jnp.where(class_ids == safe_tgt, shifted, 0.0),
                     axis=-1, keepdims=True)                   # (T, 1)

    nll = jnp.where(valid, lse - picked, 0.0)                  # (T, 1)

    # Broadcast-accumulate the tile's scalars into this p's resident partial.
    sum_ref[...] += jnp.sum(nll)
    cnt_ref[...] += jnp.sum(valid.astype(jnp.float32))


def span_loss(tgt_tokens, pred, mask, *, tile_rows=None, num_parallel=None):
    """tgt_tokens: (B, S) int; pred: (B, S, C) float (f32 or bf16); mask: (B, S)."""
    B, S, C = pred.shape
    N = B * S
    itemsize = jnp.dtype(pred.dtype).itemsize

    # PyTorch's masked_fill(mask == 0, -100), done once in the wrapper so the
    # kernel only needs one small int stream.
    tgt = jnp.where(mask == 0, -100, tgt_tokens).astype(jnp.int32)
    tgt2d = tgt.reshape(N, 1)
    pred2d = pred.reshape(N, C)

    # ---- tile size: biggest block that comfortably fits scoped VMEM ---------
    if tile_rows is None:
        target_block_bytes = 4 * 1024 * 1024          # ~8 MiB double-buffered
        tile_rows = max(8, min(2048, target_block_bytes // max(C * itemsize, 1)))
    n_rounded = ((N + 7) // 8) * 8
    tile_rows = min(int(tile_rows), n_rounded)
    tile_rows = max(8, (tile_rows // 8) * 8)          # sublane multiple of 8

    n_tiles = pl.cdiv(N, tile_rows)

    # ---- parallel row-shards (megacore on v7x; harmless elsewhere) ----------
    if num_parallel is None:
        P = 2 if n_tiles >= 2 else 1
    else:
        P = max(1, int(num_parallel))
        P = min(P, n_tiles)
    steps = pl.cdiv(n_tiles, P)
    total_rows = P * steps * tile_rows

    # ---- pad rows; padded targets carry -100 so they never contribute -------
    if total_rows != N:
        pad = total_rows - N
        tgt2d = jnp.pad(tgt2d, ((0, pad), (0, 0)), constant_values=-100)
        pred2d = jnp.pad(pred2d, ((0, pad), (0, 0)))

    # ---- explicit VMEM budget sized to the block (works on v5e/v6e/v7x) -----
    pred_buf = 2 * tile_rows * C * itemsize            # double-buffered pred
    tgt_buf = 2 * tile_rows * 128 * 4                  # (T,1) int32 pads to 128 lanes
    out_buf = 2 * 8 * 128 * 4 * 2
    vmem_limit = int(min(48 * 1024 * 1024,
                         max(16 * 1024 * 1024,
                             2 * (pred_buf + tgt_buf + out_buf) + (4 << 20))))

    sums, cnts = pl.pallas_call(
        span_loss_kernel,
        out_shape=(
            jax.ShapeDtypeStruct((P, 8, 128), jnp.float32),
            jax.ShapeDtypeStruct((P, 8, 128), jnp.float32),
        ),
        grid_spec=pltpu.PrefetchScalarGridSpec(
            num_scalar_prefetch=0,
            grid=(P, steps),
            in_specs=[
                pl.BlockSpec((tile_rows, 1), lambda p, j: (p * steps + j, 0)),
                pl.BlockSpec((tile_rows, C), lambda p, j: (p * steps + j, 0)),
            ],
            out_specs=[
                pl.BlockSpec((1, 8, 128), lambda p, j: (p, 0, 0)),
                pl.BlockSpec((1, 8, 128), lambda p, j: (p, 0, 0)),
            ],
        ),
        compiler_params=pltpu.CompilerParams(
            dimension_semantics=("parallel", "arbitrary"),
            vmem_limit_bytes=vmem_limit,
        ),
    )(tgt2d, pred2d)

    total_sum = jnp.sum(sums[:, 0, 0])
    total_cnt = jnp.sum(cnts[:, 0, 0])
    # NOTE: if no position is valid this returns NaN (sum/0), matching PyTorch.
    return total_sum / total_cnt


def span_loss_ref(tgt_tokens, pred, mask):
    """Pure-JAX reference mirroring F.cross_entropy(ignore_index=-100, mean)."""
    logp = jax.nn.log_softmax(pred.astype(jnp.float32), axis=-1)
    valid = (mask != 0)
    safe_tgt = jnp.where(valid, tgt_tokens, 0)
    nll = -jnp.take_along_axis(logp, safe_tgt[..., None].astype(jnp.int32),
                               axis=-1)[..., 0]
    nll = jnp.where(valid, nll, 0.0)
    return jnp.sum(nll) / jnp.sum(valid.astype(jnp.float32))


if __name__ == "__main__":
    key = jax.random.PRNGKey(0)

    # --- Test 1: small shapes implied by the forward (B=2, S=8, C=32). -------
    B, S, C = 2, 8, 32
    k1, k2, k3, k4, k5, k6 = jax.random.split(key, 6)
    pred = jax.random.normal(k1, (B, S, C), dtype=jnp.float32)
    tgt_tokens = jax.random.randint(k2, (B, S), 0, C, dtype=jnp.int32)
    mask = (jax.random.uniform(k3, (B, S)) > 0.3).astype(jnp.int32)
    mask = mask.at[0, 0].set(1)  # ensure at least one valid position

    out = jax.block_until_ready(span_loss(tgt_tokens, pred, mask))
    ref = jax.block_until_ready(span_loss_ref(tgt_tokens, pred, mask))
    assert jnp.allclose(out, ref, rtol=1e-5, atol=1e-5), (out, ref)

    # --- Test 2: multi-tile + parallel(2) x arbitrary grid path. -------------
    B2, S2, C2 = 4, 64, 96
    pred2 = jax.random.normal(k4, (B2, S2, C2), dtype=jnp.float32)
    tgt2 = jax.random.randint(k5, (B2, S2), 0, C2, dtype=jnp.int32)
    mask2 = (jax.random.uniform(k6, (B2, S2)) > 0.3).astype(jnp.int32)
    mask2 = mask2.at[0, 0].set(1)

    out2 = jax.block_until_ready(span_loss(tgt2, pred2, mask2, tile_rows=64))
    ref2 = jax.block_until_ready(span_loss_ref(tgt2, pred2, mask2))
    assert jnp.allclose(out2, ref2, rtol=1e-5, atol=1e-5), (out2, ref2)

    print("KERNEL_OK")
</pallas_src>

<mosaic_0001>
module attributes {stable_mosaic.version = 11 : i64} {
  func.func @span_loss_kernel(%arg0: i32, %arg1: i32, %arg2: memref<16x1xi32, #tpu.memory_space<vmem>>, %arg3: memref<16x32xf32, #tpu.memory_space<vmem>>, %arg4: memref<1x8x128xf32, #tpu.memory_space<vmem>>, %arg5: memref<1x8x128xf32, #tpu.memory_space<vmem>>) attributes {dimension_semantics = [#tpu.dimension_semantics<parallel>, #tpu.dimension_semantics<arbitrary>], iteration_bounds = array<i64: 1, 1>, scalar_prefetch = 0 : i64, scratch_operands = 0 : i64, tpu.core_type = #tpu.core_type<tc>, window_params = [{transform_indices = @transform_0, window_bounds = array<i64: 16, 1>}, {transform_indices = @transform_1, window_bounds = array<i64: 16, 32>}, {transform_indices = @transform_2, window_bounds = array<i64: 1, 8, 128>}, {transform_indices = @transform_3, window_bounds = array<i64: 1, 8, 128>}]} {
    %c0_i32 = arith.constant 0 : i32
    %0 = arith.cmpi eq, %arg1, %c0_i32 : i32
    %1 = arith.extui %0 : i1 to i32
    %c0_i32_0 = arith.constant 0 : i32
    %2 = arith.cmpi ne, %1, %c0_i32_0 : i32
    scf.if %2 {
      %cst_24 = arith.constant 0.000000e+00 : f32
      %45 = vector.broadcast %cst_24 : f32 to vector<1x8x128xf32>
      %c0_25 = arith.constant 0 : index
      %c0_26 = arith.constant 0 : index
      %c0_27 = arith.constant 0 : index
      %46 = vector.load %arg4[%c0_25, %c0_26, %c0_27] : memref<1x8x128xf32, #tpu.memory_space<vmem>>, vector<1x8x128xf32>
      tpu.vector_store %arg4[%c0_25, %c0_26, %c0_27], %45 {strides = array<i32>} : memref<1x8x128xf32, #tpu.memory_space<vmem>>, vector<1x8x128xf32>,
      %cst_28 = arith.constant 0.000000e+00 : f32
      %47 = vector.broadcast %cst_28 : f32 to vector<1x8x128xf32>
      %c0_29 = arith.constant 0 : index
      %c0_30 = arith.constant 0 : index
      %c0_31 = arith.constant 0 : index
      %48 = vector.load %arg5[%c0_29, %c0_30, %c0_31] : memref<1x8x128xf32, #tpu.memory_space<vmem>>, vector<1x8x128xf32>
      tpu.vector_store %arg5[%c0_29, %c0_30, %c0_31], %47 {strides = array<i32>} : memref<1x8x128xf32, #tpu.memory_space<vmem>>, vector<1x8x128xf32>,
    } else {
    }
    %c0 = arith.constant 0 : index
    %c0_1 = arith.constant 0 : index
    %3 = vector.load %arg3[%c0, %c0_1] : memref<16x32xf32, #tpu.memory_space<vmem>>, vector<16x32xf32>
    %cst = arith.constant dense<0xFF800000> : vector<16xf32>
    %4 = vector.multi_reduction <maximumf>, %3, %cst [1] : vector<16x32xf32> to vector<16xf32>
    %5 = vector.shape_cast %4 : vector<16xf32> to vector<16x1xf32>
    %6 = vector.broadcast %5 : vector<16x1xf32> to vector<16x32xf32>
    %7 = arith.subf %3, %6 : vector<16x32xf32>
    %8 = math.exp %7 : vector<16x32xf32>
    %cst_2 = arith.constant dense<0.000000e+00> : vector<16xf32>
    %9 = vector.multi_reduction <add>, %8, %cst_2 [1] : vector<16x32xf32> to vector<16xf32>
    %10 = vector.shape_cast %9 : vector<16xf32> to vector<16x1xf32>
    %11 = math.log %10 : vector<16x1xf32>
    %c0_3 = arith.constant 0 : index
    %c0_4 = arith.constant 0 : index
    %12 = vector.load %arg2[%c0_3, %c0_4] : memref<16x1xi32, #tpu.memory_space<vmem>>, vector<16x1xi32>
    %c0_i32_5 = arith.constant 0 : i32
    %13 = vector.broadcast %c0_i32_5 : i32 to vector<16x1xi32>
    %14 = arith.cmpi sge, %12, %13 : vector<16x1xi32>
    %c0_i32_6 = arith.constant 0 : i32
    %15 = vector.broadcast %c0_i32_6 : i32 to vector<16x1xi32>
    %16 = arith.select %14, %12, %15 : vector<16x1xi1>, vector<16x1xi32>
    %17 = tpu.iota {dimensions = array<i32: 1>} : vector<16x32xi32>
    %18 = vector.broadcast %16 : vector<16x1xi32> to vector<16x32xi32>
    %19 = arith.cmpi eq, %17, %18 : vector<16x32xi32>
    %cst_7 = arith.constant 0.000000e+00 : f32
    %20 = vector.broadcast %cst_7 : f32 to vector<16x32xf32>
    %21 = arith.select %19, %7, %20 : vector<16x32xi1>, vector<16x32xf32>
    %cst_8 = arith.constant dense<0.000000e+00> : vector<16xf32>
    %22 = vector.multi_reduction <add>, %21, %cst_8 [1] : vector<16x32xf32> to vector<16xf32>
    %23 = vector.shape_cast %22 : vector<16xf32> to vector<16x1xf32>
    %24 = arith.subf %11, %23 : vector<16x1xf32>
    %cst_9 = arith.constant 0.000000e+00 : f32
    %25 = vector.broadcast %cst_9 : f32 to vector<16x1xf32>
    %26 = arith.select %14, %24, %25 : vector<16x1xi1>, vector<16x1xf32>
    %c0_10 = arith.constant 0 : index
    %c0_11 = arith.constant 0 : index
    %c0_12 = arith.constant 0 : index
    %27 = vector.load %arg4[%c0_10, %c0_11, %c0_12] : memref<1x8x128xf32, #tpu.memory_space<vmem>>, vector<1x8x128xf32>
    %28 = vector.shape_cast %26 : vector<16x1xf32> to vector<1x16x1xf32>
    %cst_13 = arith.constant dense<0.000000e+00> : vector<1xf32>
    %29 = vector.multi_reduction <add>, %28, %cst_13 [1, 2] : vector<1x16x1xf32> to vector<1xf32>
    %30 = vector.shape_cast %29 : vector<1xf32> to vector<1x1x1xf32>
    %31 = vector.extract %30[0, 0, 0] : f32 from vector<1x1x1xf32>
    %32 = vector.broadcast %31 : f32 to vector<1x8x128xf32>
    %33 = arith.addf %27, %32 : vector<1x8x128xf32>
    %c0_14 = arith.constant 0 : index
    %c0_15 = arith.constant 0 : index
    %c0_16 = arith.constant 0 : index
    %34 = vector.load %arg4[%c0_14, %c0_15, %c0_16] : memref<1x8x128xf32, #tpu.memory_space<vmem>>, vector<1x8x128xf32>
    tpu.vector_store %arg4[%c0_14, %c0_15, %c0_16], %33 {strides = array<i32>} : memref<1x8x128xf32, #tpu.memory_space<vmem>>, vector<1x8x128xf32>,
    %c0_17 = arith.constant 0 : index
    %c0_18 = arith.constant 0 : index
    %c0_19 = arith.constant 0 : index
    %35 = vector.load %arg5[%c0_17, %c0_18, %c0_19] : memref<1x8x128xf32, #tpu.memory_space<vmem>>, vector<1x8x128xf32>
    %36 = arith.extui %14 : vector<16x1xi1> to vector<16x1xi32>
    %37 = arith.sitofp %36 : vector<16x1xi32> to vector<16x1xf32>
    %38 = vector.shape_cast %37 : vector<16x1xf32> to vector<1x16x1xf32>
    %cst_20 = arith.constant dense<0.000000e+00> : vector<1xf32>
    %39 = vector.multi_reduction <add>, %38, %cst_20 [1, 2] : vector<1x16x1xf32> to vector<1xf32>
    %40 = vector.shape_cast %39 : vector<1xf32> to vector<1x1x1xf32>
    %41 = vector.extract %40[0, 0, 0] : f32 from vector<1x1x1xf32>
    %42 = vector.broadcast %41 : f32 to vector<1x8x128xf32>
    %43 = arith.addf %35, %42 : vector<1x8x128xf32>
    %c0_21 = arith.constant 0 : index
    %c0_22 = arith.constant 0 : index
    %c0_23 = arith.constant 0 : index
    %44 = vector.load %arg5[%c0_21, %c0_22, %c0_23] : memref<1x8x128xf32, #tpu.memory_space<vmem>>, vector<1x8x128xf32>
    tpu.vector_store %arg5[%c0_21, %c0_22, %c0_23], %43 {strides = array<i32>} : memref<1x8x128xf32, #tpu.memory_space<vmem>>, vector<1x8x128xf32>,
    return
  }
  func.func @transform_0(%arg0: i32, %arg1: i32) -> (i32, i32) {
    %c1_i32 = arith.constant 1 : i32
    %0 = arith.muli %arg0, %c1_i32 : i32
    %1 = arith.addi %0, %arg1 : i32
    %c0_i32 = arith.constant 0 : i32
    %c0_i32_0 = arith.constant 0 : i32
    return %1, %c0_i32 : i32, i32
  }
  func.func @transform_1(%arg0: i32, %arg1: i32) -> (i32, i32) {
    %c1_i32 = arith.constant 1 : i32
    %0 = arith.muli %arg0, %c1_i32 : i32
    %1 = arith.addi %0, %arg1 : i32
    %c0_i32 = arith.constant 0 : i32
    %c0_i32_0 = arith.constant 0 : i32
    return %1, %c0_i32 : i32, i32
  }
  func.func @transform_2(%arg0: i32, %arg1: i32) -> (i32, i32, i32) {
    %c0_i32 = arith.constant 0 : i32
    %c0_i32_0 = arith.constant 0 : i32
    %c0_i32_1 = arith.constant 0 : i32
    return %arg0, %c0_i32, %c0_i32_0 : i32, i32, i32
  }
  func.func @transform_3(%arg0: i32, %arg1: i32) -> (i32, i32, i32) {
    %c0_i32 = arith.constant 0 : i32
    %c0_i32_0 = arith.constant 0 : i32
    %c0_i32_1 = arith.constant 0 : i32
    return %arg0, %c0_i32, %c0_i32_0 : i32, i32, i32
  }
}

</mosaic_0001>

<llo_original>
// kernel: tpu_custom_call.1
$region0: #{tpu_custom_call.1}
  #allocation0 [shape = 'u32[]', space=smem, size = 0x4, offset = 0x4, fixed_abs, tag = 'smem constant byte address 0x4 - core index']
  #allocation1 [shape = 'u32[72,128]{1,0:T(1,128)}', space=vmem, size = 0x9000, scoped, tag = 'internal scratch']
  %s0 = inlined_call_operand.vmem [shape: s32[16,1], index: 0, kind: input, shape index: {}]
  %s1 = inlined_call_operand.vmem [shape: f32[16,32], index: 1, kind: input, shape index: {}]
  %s2 = inlined_call_operand.hbm [shape: f32[1,8,128], index: 2, kind: output, shape index: {0}]
  %s3 = inlined_call_operand.hbm [shape: f32[1,8,128], index: 3, kind: output, shape index: {1}]
  %4 = xla_tuple %s2, %s3
  %s5 = sld [smem:[#allocation0]]
  $region30: #{tpu_custom_call.1} parent=0
    _
  %s7 = ssub.s32 1, %s5
  %s8 = scalar_select 0, %s7, %s5
  $region1: #{tpu_custom_call.1} parent=0
    #allocation2 [shape = 'u8[4096]{0}', space=vmem, size = 0x1000, scoped, tag = 'output window, operand 0, single buffered']
    #allocation3 [shape = 's32[1]{0}', space=sflag, size = 0x4, scoped, tag = 'scoped memory for tpu_custom_call.1']
    #allocation4 [shape = 'u8[4096]{0}', space=vmem, size = 0x1000, scoped, tag = 'output window, operand 1, single buffered']
    #allocation5 [shape = 's32[1]{0}', space=sflag, size = 0x4, scoped, tag = 'scoped memory for tpu_custom_call.1']
    %9 = vsyncpa [#allocation3], 0
    %10 = vsyncpa [#allocation5], 0
    // Predicated region
    $region2: #{tpu_custom_call.1} parent=1 // pred_check
      _
    $region3: #{tpu_custom_call.1} parent=1 // pred_check_branch
      %12 = sbr.rel (0) target = $region5
    $region4: #{tpu_custom_call.1} parent=1 // pred_region
      %s13 = sadd.s32 0, 0
      %s14 = smul.u32 2, %s13
      %p15 = scmp.lt.s32.totalorder %s14, 1
      %s16 = scalar_select %p15, %s14, 1
      %s17 = smul.addr %s16, 8
      %s18 = scalar_lea.vmem %s0, %s17
      %s19 = sadd.s32 0, 0
      %s20 = smul.u32 2, %s19
    $region5: #{tpu_custom_call.1} parent=1 // pred_fallthru
      _
    // Predicated region
    $region6: #{tpu_custom_call.1} parent=1 // pred_check
      _
    $region7: #{tpu_custom_call.1} parent=1 // pred_check_branch
      %22 = sbr.rel (0) target = $region9
    $region8: #{tpu_custom_call.1} parent=1 // pred_region
      %s23 = sadd.s32 0, 0
      %s24 = smul.u32 2, %s23
      %p25 = scmp.lt.s32.totalorder %s24, 1
      %s26 = scalar_select %p25, %s24, 1
      %s27 = smul.addr %s26, 8
      %s28 = scalar_lea.vmem %s1, %s27
      %s29 = sadd.s32 0, 0
      %s30 = smul.u32 2, %s29
    $region9: #{tpu_custom_call.1} parent=1 // pred_fallthru
      _
    %s31 = sadd.s32 0, 0
    %s32 = smul.u32 2, %s31
    %p33 = scmp.lt.s32.totalorder %s32, 1
    %s34 = scalar_select %p33, %s32, 1
    %s35 = smul.addr %s34, 8
    %s36 = scalar_lea.vmem %s0, %s35
    %s37 = sadd.s32 0, 0
    %s38 = smul.u32 2, %s37
    %p39 = scmp.lt.s32.totalorder %s38, 1
    %s40 = scalar_select %p39, %s38, 1
    %s41 = smul.addr %s40, 8
    %s42 = scalar_lea.vmem %s1, %s41
    %s43 = sadd.s32 0, 0
    %s44 = smul.u32 2, %s43
    %p45 = scmp.lt.s32.totalorder %s44, 1
    %s46 = scalar_select %p45, %s44, 1
    %s47 = smul.addr %s46, 8
    %s48 = scalar_lea.vmem %s0, %s47
    %s49 = sadd.s32 0, 0
    %s50 = smul.u32 2, %s49
    %s51 = sadd.s32 0, 0
    %s52 = smul.u32 2, %s51
    %p53 = scmp.lt.s32.totalorder %s52, 1
    %s54 = scalar_select %p53, %s52, 1
    %s55 = smul.addr %s54, 8
    %s56 = scalar_lea.vmem %s1, %s55
    %s57 = sadd.s32 0, 0
    %s58 = smul.u32 2, %s57
    %p59 = scmp.eq.s32.totalorder 0, 0
    // Predicated region
    $region10: #{tpu_custom_call.1} parent=1 // pred_check
      %p60 = pneg %p59
    $region11: #{tpu_custom_call.1} parent=1 // pred_check_branch
      %62 = sbr.rel (%p60) target = $region13
    $region12: #{tpu_custom_call.1} parent=1 // pred_region
      %63 = vst [vmem:[#allocation2] sm:$0xff] 0.0
      %64 = vst [vmem:[#allocation4] sm:$0xff] 0.0
    $region13: #{tpu_custom_call.1} parent=1 // pred_fallthru
      _
    %v65 = vld [vmem:[%s56] sm:$0xff]
    %v66 = vld [vmem:[%s56 + $0x8] sm:$0xff]
    %vm67 = vcmask 261120
    %v68 = vsel %vm67, %v65, -inf
    %69 = vmax.xlane.f32.xlu0 %v68
    %v70 = vpop.xlane.xlu0 %69
    %v71 = vsel %vm67, %v66, -inf
    %72 = vmax.xlane.f32.xlu0 %v71
    %v73 = vpop.xlane.xlu0 %72
    %v74 = vsub.f32 %v65, %v70
    %v75 = vsub.f32 %v66, %v73
    %v76 = vmul.f32 %v74, 1.442695
    %v77 = vpow.pop %v76
    %v78 = vmul.f32 %v75, 1.442695
    %v79 = vpow.pop %v78
    %v80 = vsel %vm67, %v77, 0.0
    %81 = vadd.xlane.f32.xlu0 %v80
    %v82 = vpop.xlane.xlu0 %81
    %v83 = vsel %vm67, %v79, 0.0
    %84 = vadd.xlane.f32.xlu0 %v83
    %v85 = vpop.xlane.xlu0 %84
    %v86 = vlog2.pop %v82
    %v87 = vmul.f32 %v86, 0.6931472
    %v88 = vlog2.pop %v85
    %v89 = vmul.f32 %v88, 0.6931472
    %v90 = vld [vmem:[%s48] sm:$0xff]
    %v91 = vld [vmem:[%s48 + $0x8] sm:$0xff]
    %vm92 = vcmp.ge.s32.totalorder %v90, 0
    %vm93 = vcmp.ge.s32.totalorder %v91, 0
    %v94 = vsel %vm92, %v90, 0
    %v95 = vsel %vm93, %v91, 0
    %v96 = vlaneseq
    %v97 = vand.u32 %v96, 127
    %98 = vset.pattern.permute.xlu0 0
    %99 = vperm.xlu0 %98, %v94
    %v100 = vpop.permute.xlu0 %99
    %101 = vset.pattern.permute.xlu0 0
    %102 = vperm.xlu0 %101, %v95
    %v103 = vpop.permute.xlu0 %102
    %vm104 = vcmp.eq.s32.totalorder %v97, %v100
    %vm105 = vcmp.eq.s32.totalorder %v97, %v103
    %v106 = vsel %vm104, %v74, 0.0
    %v107 = vsel %vm105, %v75, 0.0
    %v108 = vsel %vm67, %v106, 0.0
    %109 = vadd.xlane.f32.xlu0 %v108
    %v110 = vpop.xlane.xlu0 %109
    %v111 = vsel %vm67, %v107, 0.0
    %112 = vadd.xlane.f32.xlu0 %v111
    %v113 = vpop.xlane.xlu0 %112
    %v114 = vsub.f32 %v87, %v110
    %v115 = vsub.f32 %v89, %v113
    %v116 = vsel %vm92, %v114, 0.0
    %v117 = vsel %vm93, %v115, 0.0
    %v118 = vld [vmem:[#allocation2] sm:$0xff]
    %vm119 = vcmask 7168
    %v120 = vsel %vm119, %v116, 0.0
    %v121 = vsel %vm119, %v117, 0.0
    %v122 = vadd.f32 %v120, %v121
    %123 = vadd.xlane.f32.xlu0 %v122
    %v124 = vpop.xlane.xlu0 %123
    %v125 = vrot.slane %v124, 4
    %v126 = vadd.f32 %v124, %v125
    %v127 = vrot.slane %v126, 2
    %v128 = vadd.f32 %v126, %v127
    %v129 = vrot.slane %v128, 1
    %v130 = vadd.f32 %v128, %v129
    %s131 = vtos %v130
    %v132 = vstv %s131
    %v133 = vadd.f32 %v118, %v132
    %134 = vst [vmem:[#allocation2] sm:$0xff] %v133
    %v135 = vld [vmem:[#allocation4] sm:$0xff]
    %v136 = vsel %vm92, 1, 0
    %v137 = vsel %vm93, 1, 0
    %v138 = vcvt.s32.f32 %v136
    %v139 = vcvt.s32.f32 %v137
    %v140 = vsel %vm119, %v138, 0.0
    %v141 = vsel %vm119, %v139, 0.0
    %v142 = vadd.f32 %v140, %v141
    %143 = vadd.xlane.f32.xlu0 %v142
    %v144 = vpop.xlane.xlu0 %143
    %v145 = vrot.slane %v144, 4
    %v146 = vadd.f32 %v144, %v145
    %v147 = vrot.slane %v146, 2
    %v148 = vadd.f32 %v146, %v147
    %v149 = vrot.slane %v148, 1
    %v150 = vadd.f32 %v148, %v149
    %s151 = vtos %v150
    %v152 = vstv %s151
    %v153 = vadd.f32 %v135, %v152
    %154 = vst [vmem:[#allocation4] sm:$0xff] %v153
    // Predicated region
    $region14: #{tpu_custom_call.1} parent=1 // pred_check
      _
    $region15: #{tpu_custom_call.1} parent=1 // pred_check_branch
      %156 = sbr.rel (0) target = $region17
    $region16: #{tpu_custom_call.1} parent=1 // pred_region
      %158 = vsyncadd [#allocation3], 0
      %s160 = sshll.u32 [#allocation2], 4
      %s161 = int_to_ptr.vmem [resolvable:$true] %s160
      %s162 = sshll.u32 %s2, 4
      %s163 = int_to_ptr.hbm [resolvable:$true] %s162
      %165 = dma.vmem_to_hbm [thread:$0]  %s161, 128, %s163, [#allocation3]
    $region17: #{tpu_custom_call.1} parent=1 // pred_fallthru
      _
    // Predicated region
    $region18: #{tpu_custom_call.1} parent=1 // pred_check
      _
    $region19: #{tpu_custom_call.1} parent=1 // pred_check_branch
      %167 = sbr.rel (0) target = $region21
    $region20: #{tpu_custom_call.1} parent=1 // pred_region
      %169 = vsyncadd [#allocation5], 0
      %s171 = sshll.u32 [#allocation4], 4
      %s172 = int_to_ptr.vmem [resolvable:$true] %s171
      %s173 = sshll.u32 %s3, 4
      %s174 = int_to_ptr.hbm [resolvable:$true] %s173
      %176 = dma.vmem_to_hbm [thread:$0]  %s172, 128, %s174, [#allocation5]
    $region21: #{tpu_custom_call.1} parent=1 // pred_fallthru
      _
    // Predicated region
    $region22: #{tpu_custom_call.1} parent=1 // pred_check
      _
    $region23: #{tpu_custom_call.1} parent=1 // pred_check_branch
      %178 = sbr.rel (0) target = $region25
    $region24: #{tpu_custom_call.1} parent=1 // pred_region
      %180 = dma.done [#allocation3], 128
    $region25: #{tpu_custom_call.1} parent=1 // pred_fallthru
      _
    // Predicated region
    $region26: #{tpu_custom_call.1} parent=1 // pred_check
      _
    $region27: #{tpu_custom_call.1} parent=1 // pred_check_branch
      %182 = sbr.rel (0) target = $region29
    $region28: #{tpu_custom_call.1} parent=1 // pred_region
      %184 = dma.done [#allocation5], 128
    $region29: #{tpu_custom_call.1} parent=1 // pred_fallthru
      _
    %185 = vsyncpa [#allocation3], 1
    %186 = vsyncpa [#allocation5], 1

</llo_original>
